<compile_context>
chip_gen: v5e
topology: v5e:2x2
jax: 0.10.0
libtpu: 0.0.40
codegen_flags: <defaults>
</compile_context>

<pallas_src>
import jax
import jax.numpy as jnp
from jax.experimental import pallas as pl
from jax.experimental.pallas import tpu as pltpu


def _round_up(x, m):
    return ((x + m - 1) // m) * m


def _dist_linear_kernel(x_ref, w_ref, rinv_ref, o_ref):
    # x_ref:    (tb, n_feat)  raw input rows, matmul dtype
    # w_ref:    (tn, n_feat)  weight rows pre-scaled by scalar/(||W_c||+eps)
    # rinv_ref: (tb, 1)       f32 per-row 1/(||x_r||+eps)
    # o_ref:    (tb, tn)      scores tile
    cos = jax.lax.dot_general(
        x_ref[...], w_ref[...],
        dimension_numbers=(((1,), (1,)), ((), ())),   # contract feature axes
        preferred_element_type=jnp.float32)           # MXU, f32 accumulation
    o_ref[...] = (cos * rinv_ref[...]).astype(o_ref.dtype)


def _default_vmem_budget_bytes():
    # ~75% of physical VMEM: 48 MiB on v7x (64 MiB/TC), 96 MiB on v5e/v6e.
    try:
        cap = pltpu.get_tpu_info().vmem_capacity_bytes
        return int(cap * 3 // 4)
    except Exception:
        return 48 * 1024 * 1024


def dist_linear(x, weight, scalar, *, tb=256, tn=512,
                matmul_dtype=jnp.bfloat16, out_dtype=jnp.float32,
                vmem_budget_bytes=None):
    """x: (B, n_feat); weight: (num_classes, n_feat); scalar: (1,).

    Returns (B, num_classes) scores = scalar * cosine(x rows, W rows).
    """
    B, n_feat = x.shape
    C, n_feat_w = weight.shape
    assert n_feat == n_feat_w, "feature dims of x and weight must match"

    if vmem_budget_bytes is None:
        vmem_budget_bytes = _default_vmem_budget_bytes()

    x_bytes = jnp.dtype(matmul_dtype).itemsize
    w_bytes = jnp.dtype(matmul_dtype).itemsize
    o_bytes = jnp.dtype(out_dtype).itemsize

    # ---- One-time wrapper passes (XLA fuses the scale into the cast) -------
    scalar_f = scalar.reshape(()).astype(jnp.float32)
    w_f32 = weight.astype(jnp.float32)
    w_norm = jnp.sqrt(jnp.sum(w_f32 * w_f32, axis=1, keepdims=True))        # (C,1)
    w_mm = (w_f32 * (scalar_f / (w_norm + 1e-7))).astype(matmul_dtype)      # (C,nf)

    x_f32 = x.astype(jnp.float32)
    x_norm = jnp.sqrt(jnp.sum(x_f32 * x_f32, axis=1, keepdims=True))        # (B,1)
    rinv = 1.0 / (x_norm + 1e-7)                                            # (B,1) f32
    x_mm = x.astype(matmul_dtype)

    # ---- Tile selection -----------------------------------------------------
    tb_eff = min(tb, _round_up(B, 8))          # sublane-aligned batch tile
    tn_eff = min(tn, _round_up(C, 128))        # lane-dense class tile

    # v7x dual TensorCore: if there is only one batch tile, make sure the
    # class axis supplies >= 2 parallel grid steps.
    if _round_up(B, tb_eff) // tb_eff < 2:
        c128 = _round_up(C, 128)
        if c128 >= 256:
            tn_eff = min(tn_eff, _round_up(pl.cdiv(c128, 2), 128))

    def working_set(tbs, tns):
        # Double-buffered x / W / rinv / out tiles.
        return 2 * (tbs * n_feat * x_bytes + tns * n_feat * w_bytes
                    + tbs * 4 + tbs * tns * o_bytes)

    # TODO(synk): for extremely wide n_feat (>~16K) add an "arbitrary" K grid
    # axis over n_feat with a (tb, tn) f32 VMEM accumulator instead of only
    # shrinking tiles.
    while working_set(tb_eff, tn_eff) > vmem_budget_bytes and tn_eff > 128:
        tn_eff = max(128, _round_up(tn_eff // 2, 128))
    while working_set(tb_eff, tn_eff) > vmem_budget_bytes and tb_eff > 8:
        tb_eff = max(8, _round_up(tb_eff // 2, 8))

    Bp = _round_up(B, tb_eff)
    Cp = _round_up(C, tn_eff)

    x_p = x_mm if Bp == B else jnp.pad(x_mm, ((0, Bp - B), (0, 0)))
    rinv_p = rinv if Bp == B else jnp.pad(rinv, ((0, Bp - B), (0, 0)))
    w_p = w_mm if Cp == C else jnp.pad(w_mm, ((0, Cp - C), (0, 0)))

    grid = (Bp // tb_eff, Cp // tn_eff)
    grid_spec = pltpu.PrefetchScalarGridSpec(
        num_scalar_prefetch=0,
        grid=grid,
        in_specs=[
            pl.BlockSpec((tb_eff, n_feat), lambda i, j: (i, 0)),   # x tile
            pl.BlockSpec((tn_eff, n_feat), lambda i, j: (j, 0)),   # pre-scaled W
            pl.BlockSpec((tb_eff, 1), lambda i, j: (i, 0)),        # row 1/||x||
        ],
        out_specs=pl.BlockSpec((tb_eff, tn_eff), lambda i, j: (i, j)),
    )

    out_p = pl.pallas_call(
        _dist_linear_kernel,
        out_shape=jax.ShapeDtypeStruct((Bp, Cp), out_dtype),
        grid_spec=grid_spec,
        compiler_params=pltpu.CompilerParams(
            dimension_semantics=("parallel", "parallel"),
            vmem_limit_bytes=int(vmem_budget_bytes),
        ),
    )(x_p, w_p, rinv_p)

    return out_p[:B, :C]


def dist_linear_ref(x, weight, scalar):
    x_hat = x / (jnp.linalg.norm(x, axis=1, keepdims=True) + 1e-7)
    w_hat = weight / (jnp.linalg.norm(weight, axis=1, keepdims=True) + 1e-7)
    cos = jax.lax.dot_general(x_hat, w_hat, (((1,), (1,)), ((), ())),
                              precision=jax.lax.Precision.HIGHEST)
    return scalar[0] * cos


def _make_inputs(key, B, n_feat, C):
    kx, kw = jax.random.split(key)
    x = jax.random.normal(kx, (B, n_feat), dtype=jnp.float32)
    # nn.Linear.reset_parameters(): U(-1/sqrt(n_feat), 1/sqrt(n_feat)); scalar=1.
    bound = 1.0 / jnp.sqrt(jnp.float32(n_feat))
    w = jax.random.uniform(kw, (C, n_feat), dtype=jnp.float32,
                           minval=-bound, maxval=bound)
    s = jnp.ones((1,), dtype=jnp.float32)
    return x, w, s


if __name__ == "__main__":
    key = jax.random.PRNGKey(0)
    k1, k2 = jax.random.split(key)

    # Case 1: small shapes from the module spec (B=8, n_feat=32, C=16).
    x, w, s = _make_inputs(k1, 8, 32, 16)
    ref = dist_linear_ref(x, w, s)

    out = jax.block_until_ready(dist_linear(x, w, s))        # bf16 MXU path
    assert out.shape == ref.shape
    assert jnp.allclose(out, ref, atol=3e-2, rtol=3e-2), "bf16 path mismatch (case 1)"

    out_f32 = jax.block_until_ready(
        dist_linear(x, w, s, matmul_dtype=jnp.float32))
    assert jnp.allclose(out_f32, ref, atol=2e-3, rtol=2e-3), "f32 path mismatch (case 1)"

    # Case 2: exercises batch/class padding and a multi-step (parallel) grid.
    x2, w2, s2 = _make_inputs(k2, 200, 64, 200)
    ref2 = dist_linear_ref(x2, w2, s2)
    out2 = jax.block_until_ready(dist_linear(x2, w2, s2))
    assert out2.shape == ref2.shape
    assert jnp.allclose(out2, ref2, atol=3e-2, rtol=3e-2), "bf16 path mismatch (case 2)"

    print("KERNEL_OK")
</pallas_src>

<mosaic_0001>
module attributes {stable_mosaic.version = 11 : i64} {
  func.func @_dist_linear_kernel(%arg0: i32, %arg1: i32, %arg2: memref<8x32xbf16, #tpu.memory_space<vmem>>, %arg3: memref<128x32xbf16, #tpu.memory_space<vmem>>, %arg4: memref<8x1xf32, #tpu.memory_space<vmem>>, %arg5: memref<8x128xf32, #tpu.memory_space<vmem>>) attributes {dimension_semantics = [#tpu.dimension_semantics<parallel>, #tpu.dimension_semantics<parallel>], iteration_bounds = array<i64: 1, 1>, scalar_prefetch = 0 : i64, scratch_operands = 0 : i64, tpu.core_type = #tpu.core_type<tc>, window_params = [{transform_indices = @transform_0, window_bounds = array<i64: 8, 32>}, {transform_indices = @transform_1, window_bounds = array<i64: 128, 32>}, {transform_indices = @transform_2, window_bounds = array<i64: 8, 1>}, {transform_indices = @transform_3, window_bounds = array<i64: 8, 128>}]} {
    %c0 = arith.constant 0 : index
    %c0_0 = arith.constant 0 : index
    %0 = vector.load %arg2[%c0, %c0_0] : memref<8x32xbf16, #tpu.memory_space<vmem>>, vector<8x32xbf16>
    %c0_1 = arith.constant 0 : index
    %c0_2 = arith.constant 0 : index
    %1 = vector.load %arg3[%c0_1, %c0_2] : memref<128x32xbf16, #tpu.memory_space<vmem>>, vector<128x32xbf16>
    %cst = arith.constant dense<0.000000e+00> : vector<8x128xf32>
    %2 = tpu.matmul %0, %1, %cst {dimension_numbers = #tpu.dot_dimension_numbers<[1], [1], [0], [0], [0, 0, 1, 0], [], []>} : vector<8x32xbf16>, vector<128x32xbf16>, vector<8x128xf32> -> vector<8x128xf32>
    %c0_3 = arith.constant 0 : index
    %c0_4 = arith.constant 0 : index
    %3 = vector.load %arg4[%c0_3, %c0_4] : memref<8x1xf32, #tpu.memory_space<vmem>>, vector<8x1xf32>
    %4 = vector.broadcast %3 : vector<8x1xf32> to vector<8x128xf32>
    %5 = arith.mulf %2, %4 : vector<8x128xf32>
    %c0_5 = arith.constant 0 : index
    %c0_6 = arith.constant 0 : index
    %6 = vector.load %arg5[%c0_5, %c0_6] : memref<8x128xf32, #tpu.memory_space<vmem>>, vector<8x128xf32>
    tpu.vector_store %arg5[%c0_5, %c0_6], %5 {strides = array<i32>} : memref<8x128xf32, #tpu.memory_space<vmem>>, vector<8x128xf32>,
    return
  }
  func.func @transform_0(%arg0: i32, %arg1: i32) -> (i32, i32) {
    %c0_i32 = arith.constant 0 : i32
    %c0_i32_0 = arith.constant 0 : i32
    return %arg0, %c0_i32 : i32, i32
  }
  func.func @transform_1(%arg0: i32, %arg1: i32) -> (i32, i32) {
    %c0_i32 = arith.constant 0 : i32
    %c0_i32_0 = arith.constant 0 : i32
    return %arg1, %c0_i32 : i32, i32
  }
  func.func @transform_2(%arg0: i32, %arg1: i32) -> (i32, i32) {
    %c0_i32 = arith.constant 0 : i32
    %c0_i32_0 = arith.constant 0 : i32
    return %arg0, %c0_i32 : i32, i32
  }
  func.func @transform_3(%arg0: i32, %arg1: i32) -> (i32, i32) {
    %c0_i32 = arith.constant 0 : i32
    return %arg0, %arg1 : i32, i32
  }
}

</mosaic_0001>

<llo_original>
// kernel: tpu_custom_call.1
$region0: #{tpu_custom_call.1}
  #allocation0 [shape = 'u32[]', space=smem, size = 0x4, offset = 0x4, fixed_abs, tag = 'smem constant byte address 0x4 - core index']
  #allocation1 [shape = 'u32[72,128]{1,0:T(1,128)}', space=vmem, size = 0x9000, scoped, tag = 'internal scratch']
  %s0 = inlined_call_operand.vmem [shape: bf16[8,32], index: 0, kind: input, shape index: {}]
  %s1 = inlined_call_operand.vmem [shape: bf16[128,32], index: 1, kind: input, shape index: {}]
  %s2 = inlined_call_operand.vmem [shape: f32[8,1], index: 2, kind: input, shape index: {}]
  %s3 = inlined_call_operand.hbm [shape: f32[8,128], index: 3, kind: output, shape index: {}]
  %s4 = sld [smem:[#allocation0]]
  $region22: #{tpu_custom_call.1} parent=0
    _
  %s6 = ssub.s32 1, %s4
  %s7 = scalar_select 0, %s6, %s4
  $region1: #{tpu_custom_call.1} parent=0
    #allocation2 [shape = 'u8[4096]{0}', space=vmem, size = 0x1000, scoped, tag = 'output window, operand 0, single buffered']
    #allocation3 [shape = 's32[1]{0}', space=sflag, size = 0x4, scoped, tag = 'scoped memory for tpu_custom_call.1']
    %8 = vsyncpa [#allocation3], 0
    // Predicated region
    $region2: #{tpu_custom_call.1} parent=1 // pred_check
      _
    $region3: #{tpu_custom_call.1} parent=1 // pred_check_branch
      %10 = sbr.rel (0) target = $region5
    $region4: #{tpu_custom_call.1} parent=1 // pred_region
      _
    $region5: #{tpu_custom_call.1} parent=1 // pred_fallthru
      _
    // Predicated region
    $region6: #{tpu_custom_call.1} parent=1 // pred_check
      _
    $region7: #{tpu_custom_call.1} parent=1 // pred_check_branch
      %12 = sbr.rel (0) target = $region9
    $region8: #{tpu_custom_call.1} parent=1 // pred_region
      _
    $region9: #{tpu_custom_call.1} parent=1 // pred_fallthru
      _
    // Predicated region
    $region10: #{tpu_custom_call.1} parent=1 // pred_check
      _
    $region11: #{tpu_custom_call.1} parent=1 // pred_check_branch
      %14 = sbr.rel (0) target = $region13
    $region12: #{tpu_custom_call.1} parent=1 // pred_region
      _
    $region13: #{tpu_custom_call.1} parent=1 // pred_fallthru
      _
    %v15 = vld [vmem:[%s0] sm:$0xf]
    %v16 = vld [vmem:[%s1] sm:$0xf]
    %v17 = vld [vmem:[%s1 + $0x4] sm:$0xf]
    %v18 = vld [vmem:[%s1 + $0x8] sm:$0xf]
    %v19 = vld [vmem:[%s1 + $0xc] sm:$0xf]
    %v20 = vld [vmem:[%s1 + $0x10] sm:$0xf]
    %v21 = vld [vmem:[%s1 + $0x14] sm:$0xf]
    %v22 = vld [vmem:[%s1 + $0x18] sm:$0xf]
    %v23 = vld [vmem:[%s1 + $0x1c] sm:$0xf]
    %v24 = vld [vmem:[%s1 + $0x20] sm:$0xf]
    %v25 = vld [vmem:[%s1 + $0x24] sm:$0xf]
    %v26 = vld [vmem:[%s1 + $0x28] sm:$0xf]
    %v27 = vld [vmem:[%s1 + $0x2c] sm:$0xf]
    %v28 = vld [vmem:[%s1 + $0x30] sm:$0xf]
    %v29 = vld [vmem:[%s1 + $0x34] sm:$0xf]
    %v30 = vld [vmem:[%s1 + $0x38] sm:$0xf]
    %v31 = vld [vmem:[%s1 + $0x3c] sm:$0xf]
    %v48 = vunpack.c.l.b16 %v16
    %v49 = vunpack.c.l.b16 %v17
    %v50 = vunpack.c.l.b16 %v18
    %v51 = vunpack.c.l.b16 %v19
    %v52 = vunpack.c.l.b16 %v20
    %v53 = vunpack.c.l.b16 %v21
    %v54 = vunpack.c.l.b16 %v22
    %v55 = vunpack.c.l.b16 %v23
    %v56 = vunpack.c.l.b16 %v24
    %v57 = vunpack.c.l.b16 %v25
    %v58 = vunpack.c.l.b16 %v26
    %v59 = vunpack.c.l.b16 %v27
    %v60 = vunpack.c.l.b16 %v28
    %v61 = vunpack.c.l.b16 %v29
    %v62 = vunpack.c.l.b16 %v30
    %v63 = vunpack.c.l.b16 %v31
    %v64 = vpack.c.b16 %v49, %v48
    %v65 = vpack.c.b16 %v51, %v50
    %v66 = vpack.c.b16 %v53, %v52
    %v67 = vpack.c.b16 %v55, %v54
    %v68 = vpack.c.b16 %v57, %v56
    %v69 = vpack.c.b16 %v59, %v58
    %v70 = vpack.c.b16 %v61, %v60
    %v71 = vpack.c.b16 %v63, %v62
    %vm72 = vcmask 261120
    %v74 = vsel %vm72, %v15, 0
    %v77 = vsel %vm72, %v64, 0
    %v80 = vsel %vm72, %v65, 0
    %v83 = vsel %vm72, %v66, 0
    %v86 = vsel %vm72, %v67, 0
    %v89 = vsel %vm72, %v68, 0
    %v92 = vsel %vm72, %v69, 0
    %v95 = vsel %vm72, %v70, 0
    %v98 = vsel %vm72, %v71, 0
    %100 = vmatpush.bf16.xpose.msra.mxu0 %v98
    %101 = vmatpush.bf16.xpose.msra.mxu0 %v95
    %102 = vmatpush.bf16.xpose.msra.mxu0 %v92
    %103 = vmatpush.bf16.xpose.msra.mxu0 %v89
    %104 = vmatpush.bf16.xpose.msra.mxu0 %v86
    %105 = vmatpush.bf16.xpose.msra.mxu0 %v83
    %106 = vmatpush.bf16.xpose.msra.mxu0 %v80
    %107 = vmatpush.bf16.xpose.msra.mxu0 %v77
    %108 = vmatmul.bf16.gmra.mxu0 %v74
    %v109 = vpop.f32.mrf.mxu0
    %v110 = vadd.f32 0.0, %v109
    %v111 = vpop.f32.mrf.mxu0
    %112 = vdwg.mxu0
    %v113 = vld [vmem:[%s2] sm:$0xff]
    %115 = vset.pattern.permute.xlu0 0
    %116 = vperm.xlu0 %115, %v113
    %v117 = vpop.permute.xlu0 %116
    %v119 = vmul.f32 %v110, %v117
    %120 = vst [vmem:[#allocation2] sm:$0xff] %v119
    // Predicated region
    $region14: #{tpu_custom_call.1} parent=1 // pred_check
      _
    $region15: #{tpu_custom_call.1} parent=1 // pred_check_branch
      %122 = sbr.rel (0) target = $region17
    $region16: #{tpu_custom_call.1} parent=1 // pred_region
      %124 = vsyncadd [#allocation3], 0
      %s126 = sshll.u32 [#allocation2], 4
      %s127 = int_to_ptr.vmem [resolvable:$true] %s126
      %s128 = sshll.u32 %s3, 4
      %s129 = int_to_ptr.hbm [resolvable:$true] %s128
      %131 = dma.vmem_to_hbm [thread:$0]  %s127, 128, %s129, [#allocation3]
    $region17: #{tpu_custom_call.1} parent=1 // pred_fallthru
      _
    // Predicated region
    $region18: #{tpu_custom_call.1} parent=1 // pred_check
      _
    $region19: #{tpu_custom_call.1} parent=1 // pred_check_branch
      %133 = sbr.rel (0) target = $region21
    $region20: #{tpu_custom_call.1} parent=1 // pred_region
      %135 = dma.done [#allocation3], 128
    $region21: #{tpu_custom_call.1} parent=1 // pred_fallthru
      _
    %136 = vsyncpa [#allocation3], 1

</llo_original>
